<compile_context>
chip_gen: v7x
topology: tpu7x:2x2x1
jax: 0.10.0
libtpu: 0.0.40
codegen_flags: <defaults>
</compile_context>

<pallas_src>
import functools

import jax
import jax.numpy as jnp
from jax.experimental import pallas as pl
from jax.experimental.pallas import tpu as pltpu


# ----------------------------------------------------------------------------- kernel
def _stats_kernel(p_ref, t_ref, nn_ref,
                  s_p, s_t, s_pp, s_tt, s_pt,
                  *, n_total, chunks, unroll):
    """grid = (B blocks [parallel], N tiles [arbitrary / reduction])."""
    n_idx = pl.program_id(1)

    @pl.when(n_idx == 0)
    def _init():
        s_p[...] = jnp.zeros_like(s_p)
        s_t[...] = jnp.zeros_like(s_t)
        s_pp[...] = jnp.zeros_like(s_pp)
        s_tt[...] = jnp.zeros_like(s_tt)
        s_pt[...] = jnp.zeros_like(s_pt)

    tile_b = s_p.shape[0]

    if chunks == unroll:
        # Small tile: fully unrolled lane-chunk accumulation (pure VPU adds).
        pc = p_ref[:, 0:128].astype(jnp.float32)
        tc = t_ref[:, 0:128].astype(jnp.float32)
        a_p, a_t = pc, tc
        a_pp, a_tt, a_pt = pc * pc, tc * tc, pc * tc
        for c in range(1, chunks):
            pc = p_ref[:, c * 128:(c + 1) * 128].astype(jnp.float32)
            tc = t_ref[:, c * 128:(c + 1) * 128].astype(jnp.float32)
            a_p = a_p + pc
            a_t = a_t + tc
            a_pp = a_pp + pc * pc
            a_tt = a_tt + tc * tc
            a_pt = a_pt + pc * tc
    else:
        # Large tile: bounded fori_loop with a statically unrolled inner body so the
        # five accumulators stay in vregs and the instruction stream stays small.
        zero = jnp.zeros((tile_b, 128), jnp.float32)

        def body(s, carry):
            a_p, a_t, a_pp, a_tt, a_pt = carry
            base = s * (unroll * 128)
            for u in range(unroll):
                off = pl.multiple_of(base + u * 128, 128)
                pc = p_ref[:, pl.ds(off, 128)].astype(jnp.float32)
                tc = t_ref[:, pl.ds(off, 128)].astype(jnp.float32)
                a_p = a_p + pc
                a_t = a_t + tc
                a_pp = a_pp + pc * pc
                a_tt = a_tt + tc * tc
                a_pt = a_pt + pc * tc
            return (a_p, a_t, a_pp, a_tt, a_pt)

        a_p, a_t, a_pp, a_tt, a_pt = jax.lax.fori_loop(
            0, chunks // unroll, body, (zero, zero, zero, zero, zero))

    # One VMEM read-modify-write per statistic per tile (keeps the single vst slot cold).
    s_p[...] += a_p
    s_t[...] += a_t
    s_pp[...] += a_pp
    s_tt[...] += a_tt
    s_pt[...] += a_pt

    @pl.when(n_idx == pl.num_programs(1) - 1)
    def _finalize():
        n = jnp.float32(n_total)
        eps = jnp.float32(1e-8)
        sum_p = jnp.sum(s_p[...], axis=1, keepdims=True)       # (tile_b, 1) XLU reduces
        sum_t = jnp.sum(s_t[...], axis=1, keepdims=True)
        w1 = jnp.sum(s_pp[...], axis=1, keepdims=True)
        w2 = jnp.sum(s_tt[...], axis=1, keepdims=True)
        w12 = jnp.sum(s_pt[...], axis=1, keepdims=True)
        # F.cosine_similarity clamps each norm separately:
        #   cos^2 = w12^2 / (max(w1, eps^2) * max(w2, eps^2))
        corr = (w12 * w12) / (jnp.maximum(w1, eps * eps) * jnp.maximum(w2, eps * eps))
        # torch.var(dim=1), correction=1, from the fused one-pass sums.
        # TODO(synk): for inputs with |mean| >> std this one-pass form can cancel in f32;
        # a per-row shift / Welford-style tile combine would be needed for full robustness.
        var_p = (w1 - sum_p * sum_p / n) / (n - 1.0)
        var_t = (w2 - sum_t * sum_t / n) / (n - 1.0)
        nn_ref[...] = corr / (var_p * var_t + eps)


# ----------------------------------------------------------------------------- sizing
def _vmem_capacity_bytes():
    try:
        info = pltpu.get_tpu_info()
        for attr in ("vmem_capacity_bytes", "vmem_bytes", "vmem_size_bytes"):
            v = getattr(info, attr, None)
            if v:
                return int(v)
    except Exception:
        pass
    return 64 << 20  # conservative (v7x-sized) fallback


def _choose_tile_b(B, itemsize, cap=32):
    """Rows per block: <= cap to keep 5 accumulators in-register, and a multiple of the
    sublane tile (8 for 4-byte, 16 for 2-byte dtypes) unless the block is full-extent."""
    sub = 8 if itemsize >= 4 else (16 if itemsize == 2 else 32)
    if B <= max(cap, sub):
        return B
    tb = (cap // sub) * sub
    while tb >= sub:
        if B % tb == 0:
            return tb
        tb -= sub
    return B  # no valid split -> single full-extent block


def _choose_tile_n(N, tile_b, itemsize, budget_bytes):
    """Columns per block from a per-buffer byte budget; multiple of 128 lanes, dividing
    the 128-padded N so no extra padding beyond lane alignment is needed."""
    n128 = ((N + 127) // 128) * 128
    cols = max(128, (budget_bytes // max(1, tile_b * itemsize)) // 128 * 128)
    cols = min(cols, n128)
    while n128 % cols != 0:
        cols -= 128
    return cols, n128


# ----------------------------------------------------------------------------- wrapper
def median_nn_corr(predictions, targets):
    """predictions, targets: (B, N) float32/bfloat16 -> scalar float32."""
    assert predictions.shape == targets.shape
    B, N = predictions.shape
    itemsize = jnp.dtype(predictions.dtype).itemsize

    vmem_cap = _vmem_capacity_bytes()
    if vmem_cap >= (96 << 20):          # v5e / v6e: 128 MiB physical VMEM
        per_buf_budget, vmem_limit, max_depth = 6 << 20, 96 << 20, 3
    else:                               # v7x: 64 MiB per TensorCore
        per_buf_budget, vmem_limit, max_depth = 4 << 20, 44 << 20, 2

    tile_b = _choose_tile_b(B, itemsize)
    num_b = B // tile_b
    tile_n, n_pad = _choose_tile_n(N, tile_b, itemsize, per_buf_budget)
    num_n = n_pad // tile_n
    chunks = tile_n // 128
    if chunks <= 8:
        unroll = chunks
    else:
        unroll = next(u for u in (8, 4, 2, 1) if chunks % u == 0)

    p, t = predictions, targets
    if n_pad != N:
        # Zero padding is exact: zeros contribute nothing to any of the fused sums,
        # and n_total below stays at the original N.
        pad = ((0, 0), (0, n_pad - N))
        p = jnp.pad(p, pad)
        t = jnp.pad(t, pad)

    in_map = lambda b, n: (b, n)
    if max_depth >= 3 and num_n >= 4:
        try:
            in_spec = pl.BlockSpec((tile_b, tile_n), in_map,
                                   pipeline_mode=pl.Buffered(3))
        except TypeError:
            in_spec = pl.BlockSpec((tile_b, tile_n), in_map)
    else:
        in_spec = pl.BlockSpec((tile_b, tile_n), in_map)

    # NOTE: the (B, 1) output is lane-sparse but only B floats total; kept for
    # lowering-simplicity (the median below consumes it in plain XLA anyway).
    nn = pl.pallas_call(
        functools.partial(_stats_kernel, n_total=N, chunks=chunks, unroll=unroll),
        out_shape=jax.ShapeDtypeStruct((B, 1), jnp.float32),
        grid_spec=pltpu.PrefetchScalarGridSpec(
            num_scalar_prefetch=0,
            grid=(num_b, num_n),
            in_specs=[in_spec, in_spec],
            out_specs=pl.BlockSpec((tile_b, 1), lambda b, n: (b, 0)),
            scratch_shapes=[pltpu.VMEM((tile_b, 128), jnp.float32) for _ in range(5)],
        ),
        compiler_params=pltpu.CompilerParams(
            dimension_semantics=("parallel", "arbitrary"),
            vmem_limit_bytes=int(vmem_limit),
        ),
        cost_estimate=pl.CostEstimate(
            flops=8 * B * n_pad,
            transcendentals=0,
            bytes_accessed=2 * B * n_pad * itemsize + B * 4,
        ),
    )(p, t)

    # torch.median of the (B,) vector: lower of the two middle values. A sort of B
    # floats is negligible in plain XLA and removes the old O(B^2) second kernel.
    nn_flat = nn.reshape(B)
    return jnp.sort(nn_flat)[(B - 1) // 2]


# ----------------------------------------------------------------------------- reference
def _reference(predictions, targets):
    eps = 1e-8
    p = predictions.astype(jnp.float32)
    t = targets.astype(jnp.float32)
    w12 = jnp.sum(p * t, axis=1)
    w1 = jnp.sum(p * p, axis=1)
    w2 = jnp.sum(t * t, axis=1)
    corr = (w12 * w12) / (jnp.maximum(w1, eps * eps) * jnp.maximum(w2, eps * eps))
    var_p = jnp.var(p, axis=1, ddof=1)
    var_t = jnp.var(t, axis=1, ddof=1)
    nn_corr = corr / (var_p * var_t + eps)
    B = nn_corr.shape[0]
    return jnp.sort(nn_corr)[(B - 1) // 2]  # torch.median: lower middle element


if __name__ == "__main__":
    key = jax.random.PRNGKey(0)

    # Small shapes: single-tile case, a multi-chunk fori_loop case, and a ragged-N case
    # that exercises the lane padding path.
    for (B, N) in [(8, 256), (16, 4096), (12, 300)]:
        kp, kt = jax.random.split(jax.random.fold_in(key, B * 100003 + N))
        predictions = jax.random.normal(kp, (B, N), dtype=jnp.float32)
        targets = predictions + 0.5 * jax.random.normal(kt, (B, N), dtype=jnp.float32)

        result = jax.block_until_ready(median_nn_corr(predictions, targets))
        ref = jax.block_until_ready(_reference(predictions, targets))
        assert jnp.allclose(result, ref, rtol=5e-4, atol=1e-5), (B, N, result, ref)

    print("KERNEL_OK")
</pallas_src>

<mosaic_0001>
module attributes {stable_mosaic.version = 11 : i64} {
  func.func @_stats_kernel(%arg0: i32, %arg1: i32, %arg2: memref<8x256xf32, #tpu.memory_space<vmem>>, %arg3: memref<8x256xf32, #tpu.memory_space<vmem>>, %arg4: memref<8x1xf32, #tpu.memory_space<vmem>>, %arg5: memref<8x128xf32, #tpu.memory_space<vmem>>, %arg6: memref<8x128xf32, #tpu.memory_space<vmem>>, %arg7: memref<8x128xf32, #tpu.memory_space<vmem>>, %arg8: memref<8x128xf32, #tpu.memory_space<vmem>>, %arg9: memref<8x128xf32, #tpu.memory_space<vmem>>) attributes {dimension_semantics = [#tpu.dimension_semantics<parallel>, #tpu.dimension_semantics<arbitrary>], iteration_bounds = array<i64: 1, 1>, scalar_prefetch = 0 : i64, scratch_operands = 5 : i64, tpu.core_type = #tpu.core_type<tc>, window_params = [{transform_indices = @transform_0, window_bounds = array<i64: 8, 256>}, {transform_indices = @transform_1, window_bounds = array<i64: 8, 256>}, {transform_indices = @transform_2, window_bounds = array<i64: 8, 1>}]} {
    %c0_i32 = arith.constant 0 : i32
    %0 = arith.cmpi eq, %arg1, %c0_i32 : i32
    %1 = arith.extui %0 : i1 to i32
    %c0_i32_0 = arith.constant 0 : i32
    %2 = arith.cmpi ne, %1, %c0_i32_0 : i32
    scf.if %2 {
      %cst = arith.constant 0.000000e+00 : f32
      %36 = vector.broadcast %cst : f32 to vector<8x128xf32>
      %c0_29 = arith.constant 0 : index
      %c0_30 = arith.constant 0 : index
      %37 = vector.load %arg5[%c0_29, %c0_30] : memref<8x128xf32, #tpu.memory_space<vmem>>, vector<8x128xf32>
      tpu.vector_store %arg5[%c0_29, %c0_30], %36 {strides = array<i32>} : memref<8x128xf32, #tpu.memory_space<vmem>>, vector<8x128xf32>,
      %cst_31 = arith.constant 0.000000e+00 : f32
      %38 = vector.broadcast %cst_31 : f32 to vector<8x128xf32>
      %c0_32 = arith.constant 0 : index
      %c0_33 = arith.constant 0 : index
      %39 = vector.load %arg6[%c0_32, %c0_33] : memref<8x128xf32, #tpu.memory_space<vmem>>, vector<8x128xf32>
      tpu.vector_store %arg6[%c0_32, %c0_33], %38 {strides = array<i32>} : memref<8x128xf32, #tpu.memory_space<vmem>>, vector<8x128xf32>,
      %cst_34 = arith.constant 0.000000e+00 : f32
      %40 = vector.broadcast %cst_34 : f32 to vector<8x128xf32>
      %c0_35 = arith.constant 0 : index
      %c0_36 = arith.constant 0 : index
      %41 = vector.load %arg7[%c0_35, %c0_36] : memref<8x128xf32, #tpu.memory_space<vmem>>, vector<8x128xf32>
      tpu.vector_store %arg7[%c0_35, %c0_36], %40 {strides = array<i32>} : memref<8x128xf32, #tpu.memory_space<vmem>>, vector<8x128xf32>,
      %cst_37 = arith.constant 0.000000e+00 : f32
      %42 = vector.broadcast %cst_37 : f32 to vector<8x128xf32>
      %c0_38 = arith.constant 0 : index
      %c0_39 = arith.constant 0 : index
      %43 = vector.load %arg8[%c0_38, %c0_39] : memref<8x128xf32, #tpu.memory_space<vmem>>, vector<8x128xf32>
      tpu.vector_store %arg8[%c0_38, %c0_39], %42 {strides = array<i32>} : memref<8x128xf32, #tpu.memory_space<vmem>>, vector<8x128xf32>,
      %cst_40 = arith.constant 0.000000e+00 : f32
      %44 = vector.broadcast %cst_40 : f32 to vector<8x128xf32>
      %c0_41 = arith.constant 0 : index
      %c0_42 = arith.constant 0 : index
      %45 = vector.load %arg9[%c0_41, %c0_42] : memref<8x128xf32, #tpu.memory_space<vmem>>, vector<8x128xf32>
      tpu.vector_store %arg9[%c0_41, %c0_42], %44 {strides = array<i32>} : memref<8x128xf32, #tpu.memory_space<vmem>>, vector<8x128xf32>,
    } else {
    }
    %c0 = arith.constant 0 : index
    %c0_1 = arith.constant 0 : index
    %3 = vector.load %arg2[%c0, %c0_1] : memref<8x256xf32, #tpu.memory_space<vmem>>, vector<8x128xf32>
    %c0_2 = arith.constant 0 : index
    %c0_3 = arith.constant 0 : index
    %4 = vector.load %arg3[%c0_2, %c0_3] : memref<8x256xf32, #tpu.memory_space<vmem>>, vector<8x128xf32>
    %5 = arith.mulf %3, %3 : vector<8x128xf32>
    %6 = arith.mulf %4, %4 : vector<8x128xf32>
    %7 = arith.mulf %3, %4 : vector<8x128xf32>
    %c0_4 = arith.constant 0 : index
    %c128 = arith.constant 128 : index
    %8 = vector.load %arg2[%c0_4, %c128] : memref<8x256xf32, #tpu.memory_space<vmem>>, vector<8x128xf32>
    %c0_5 = arith.constant 0 : index
    %c128_6 = arith.constant 128 : index
    %9 = vector.load %arg3[%c0_5, %c128_6] : memref<8x256xf32, #tpu.memory_space<vmem>>, vector<8x128xf32>
    %10 = arith.addf %3, %8 : vector<8x128xf32>
    %11 = arith.addf %4, %9 : vector<8x128xf32>
    %12 = arith.mulf %8, %8 : vector<8x128xf32>
    %13 = arith.addf %5, %12 : vector<8x128xf32>
    %14 = arith.mulf %9, %9 : vector<8x128xf32>
    %15 = arith.addf %6, %14 : vector<8x128xf32>
    %16 = arith.mulf %8, %9 : vector<8x128xf32>
    %17 = arith.addf %7, %16 : vector<8x128xf32>
    %c0_7 = arith.constant 0 : index
    %c0_8 = arith.constant 0 : index
    %18 = vector.load %arg5[%c0_7, %c0_8] : memref<8x128xf32, #tpu.memory_space<vmem>>, vector<8x128xf32>
    %19 = arith.addf %18, %10 : vector<8x128xf32>
    %c0_9 = arith.constant 0 : index
    %c0_10 = arith.constant 0 : index
    %20 = vector.load %arg5[%c0_9, %c0_10] : memref<8x128xf32, #tpu.memory_space<vmem>>, vector<8x128xf32>
    tpu.vector_store %arg5[%c0_9, %c0_10], %19 {strides = array<i32>} : memref<8x128xf32, #tpu.memory_space<vmem>>, vector<8x128xf32>,
    %c0_11 = arith.constant 0 : index
    %c0_12 = arith.constant 0 : index
    %21 = vector.load %arg6[%c0_11, %c0_12] : memref<8x128xf32, #tpu.memory_space<vmem>>, vector<8x128xf32>
    %22 = arith.addf %21, %11 : vector<8x128xf32>
    %c0_13 = arith.constant 0 : index
    %c0_14 = arith.constant 0 : index
    %23 = vector.load %arg6[%c0_13, %c0_14] : memref<8x128xf32, #tpu.memory_space<vmem>>, vector<8x128xf32>
    tpu.vector_store %arg6[%c0_13, %c0_14], %22 {strides = array<i32>} : memref<8x128xf32, #tpu.memory_space<vmem>>, vector<8x128xf32>,
    %c0_15 = arith.constant 0 : index
    %c0_16 = arith.constant 0 : index
    %24 = vector.load %arg7[%c0_15, %c0_16] : memref<8x128xf32, #tpu.memory_space<vmem>>, vector<8x128xf32>
    %25 = arith.addf %24, %13 : vector<8x128xf32>
    %c0_17 = arith.constant 0 : index
    %c0_18 = arith.constant 0 : index
    %26 = vector.load %arg7[%c0_17, %c0_18] : memref<8x128xf32, #tpu.memory_space<vmem>>, vector<8x128xf32>
    tpu.vector_store %arg7[%c0_17, %c0_18], %25 {strides = array<i32>} : memref<8x128xf32, #tpu.memory_space<vmem>>, vector<8x128xf32>,
    %c0_19 = arith.constant 0 : index
    %c0_20 = arith.constant 0 : index
    %27 = vector.load %arg8[%c0_19, %c0_20] : memref<8x128xf32, #tpu.memory_space<vmem>>, vector<8x128xf32>
    %28 = arith.addf %27, %15 : vector<8x128xf32>
    %c0_21 = arith.constant 0 : index
    %c0_22 = arith.constant 0 : index
    %29 = vector.load %arg8[%c0_21, %c0_22] : memref<8x128xf32, #tpu.memory_space<vmem>>, vector<8x128xf32>
    tpu.vector_store %arg8[%c0_21, %c0_22], %28 {strides = array<i32>} : memref<8x128xf32, #tpu.memory_space<vmem>>, vector<8x128xf32>,
    %c0_23 = arith.constant 0 : index
    %c0_24 = arith.constant 0 : index
    %30 = vector.load %arg9[%c0_23, %c0_24] : memref<8x128xf32, #tpu.memory_space<vmem>>, vector<8x128xf32>
    %31 = arith.addf %30, %17 : vector<8x128xf32>
    %c0_25 = arith.constant 0 : index
    %c0_26 = arith.constant 0 : index
    %32 = vector.load %arg9[%c0_25, %c0_26] : memref<8x128xf32, #tpu.memory_space<vmem>>, vector<8x128xf32>
    tpu.vector_store %arg9[%c0_25, %c0_26], %31 {strides = array<i32>} : memref<8x128xf32, #tpu.memory_space<vmem>>, vector<8x128xf32>,
    %c0_i32_27 = arith.constant 0 : i32
    %33 = arith.cmpi eq, %arg1, %c0_i32_27 : i32
    %34 = arith.extui %33 : i1 to i32
    %c0_i32_28 = arith.constant 0 : i32
    %35 = arith.cmpi ne, %34, %c0_i32_28 : i32
    scf.if %35 {
      %c0_29 = arith.constant 0 : index
      %c0_30 = arith.constant 0 : index
      %36 = vector.load %arg5[%c0_29, %c0_30] : memref<8x128xf32, #tpu.memory_space<vmem>>, vector<8x128xf32>
      %cst = arith.constant dense<0.000000e+00> : vector<8xf32>
      %37 = vector.multi_reduction <add>, %36, %cst [1] : vector<8x128xf32> to vector<8xf32>
      %38 = vector.shape_cast %37 : vector<8xf32> to vector<8x1xf32>
      %c0_31 = arith.constant 0 : index
      %c0_32 = arith.constant 0 : index
      %39 = vector.load %arg6[%c0_31, %c0_32] : memref<8x128xf32, #tpu.memory_space<vmem>>, vector<8x128xf32>
      %cst_33 = arith.constant dense<0.000000e+00> : vector<8xf32>
      %40 = vector.multi_reduction <add>, %39, %cst_33 [1] : vector<8x128xf32> to vector<8xf32>
      %41 = vector.shape_cast %40 : vector<8xf32> to vector<8x1xf32>
      %c0_34 = arith.constant 0 : index
      %c0_35 = arith.constant 0 : index
      %42 = vector.load %arg7[%c0_34, %c0_35] : memref<8x128xf32, #tpu.memory_space<vmem>>, vector<8x128xf32>
      %cst_36 = arith.constant dense<0.000000e+00> : vector<8xf32>
      %43 = vector.multi_reduction <add>, %42, %cst_36 [1] : vector<8x128xf32> to vector<8xf32>
      %44 = vector.shape_cast %43 : vector<8xf32> to vector<8x1xf32>
      %c0_37 = arith.constant 0 : index
      %c0_38 = arith.constant 0 : index
      %45 = vector.load %arg8[%c0_37, %c0_38] : memref<8x128xf32, #tpu.memory_space<vmem>>, vector<8x128xf32>
      %cst_39 = arith.constant dense<0.000000e+00> : vector<8xf32>
      %46 = vector.multi_reduction <add>, %45, %cst_39 [1] : vector<8x128xf32> to vector<8xf32>
      %47 = vector.shape_cast %46 : vector<8xf32> to vector<8x1xf32>
      %c0_40 = arith.constant 0 : index
      %c0_41 = arith.constant 0 : index
      %48 = vector.load %arg9[%c0_40, %c0_41] : memref<8x128xf32, #tpu.memory_space<vmem>>, vector<8x128xf32>
      %cst_42 = arith.constant dense<0.000000e+00> : vector<8xf32>
      %49 = vector.multi_reduction <add>, %48, %cst_42 [1] : vector<8x128xf32> to vector<8xf32>
      %50 = vector.shape_cast %49 : vector<8xf32> to vector<8x1xf32>
      %51 = arith.mulf %50, %50 : vector<8x1xf32>
      %cst_43 = arith.constant 9.99999993E-9 : f32
      %cst_44 = arith.constant 9.99999993E-9 : f32
      %52 = arith.mulf %cst_43, %cst_44 : f32
      %53 = vector.broadcast %52 : f32 to vector<8x1xf32>
      %54 = arith.maximumf %44, %53 : vector<8x1xf32>
      %cst_45 = arith.constant 9.99999993E-9 : f32
      %cst_46 = arith.constant 9.99999993E-9 : f32
      %55 = arith.mulf %cst_45, %cst_46 : f32
      %56 = vector.broadcast %55 : f32 to vector<8x1xf32>
      %57 = arith.maximumf %47, %56 : vector<8x1xf32>
      %58 = arith.mulf %54, %57 : vector<8x1xf32>
      %59 = arith.divf %51, %58 : vector<8x1xf32>
      %60 = arith.mulf %38, %38 : vector<8x1xf32>
      %cst_47 = arith.constant 2.560000e+02 : f32
      %61 = vector.broadcast %cst_47 : f32 to vector<8x1xf32>
      %62 = arith.divf %60, %61 : vector<8x1xf32>
      %63 = arith.subf %44, %62 : vector<8x1xf32>
      %cst_48 = arith.constant 2.560000e+02 : f32
      %cst_49 = arith.constant 1.000000e+00 : f32
      %64 = arith.subf %cst_48, %cst_49 : f32
      %65 = vector.broadcast %64 : f32 to vector<8x1xf32>
      %66 = arith.divf %63, %65 : vector<8x1xf32>
      %67 = arith.mulf %41, %41 : vector<8x1xf32>
      %cst_50 = arith.constant 2.560000e+02 : f32
      %68 = vector.broadcast %cst_50 : f32 to vector<8x1xf32>
      %69 = arith.divf %67, %68 : vector<8x1xf32>
      %70 = arith.subf %47, %69 : vector<8x1xf32>
      %cst_51 = arith.constant 2.560000e+02 : f32
      %cst_52 = arith.constant 1.000000e+00 : f32
      %71 = arith.subf %cst_51, %cst_52 : f32
      %72 = vector.broadcast %71 : f32 to vector<8x1xf32>
      %73 = arith.divf %70, %72 : vector<8x1xf32>
      %74 = arith.mulf %66, %73 : vector<8x1xf32>
      %cst_53 = arith.constant 9.99999993E-9 : f32
      %75 = vector.broadcast %cst_53 : f32 to vector<8x1xf32>
      %76 = arith.addf %74, %75 : vector<8x1xf32>
      %77 = arith.divf %59, %76 : vector<8x1xf32>
      %c0_54 = arith.constant 0 : index
      %c0_55 = arith.constant 0 : index
      %78 = vector.load %arg4[%c0_54, %c0_55] : memref<8x1xf32, #tpu.memory_space<vmem>>, vector<8x1xf32>
      tpu.vector_store %arg4[%c0_54, %c0_55], %77 {strides = array<i32>} : memref<8x1xf32, #tpu.memory_space<vmem>>, vector<8x1xf32>,
    } else {
    }
    return
  }
  func.func @transform_0(%arg0: i32, %arg1: i32) -> (i32, i32) {
    %c0_i32 = arith.constant 0 : i32
    return %arg0, %arg1 : i32, i32
  }
  func.func @transform_1(%arg0: i32, %arg1: i32) -> (i32, i32) {
    %c0_i32 = arith.constant 0 : i32
    return %arg0, %arg1 : i32, i32
  }
  func.func @transform_2(%arg0: i32, %arg1: i32) -> (i32, i32) {
    %c0_i32 = arith.constant 0 : i32
    %c0_i32_0 = arith.constant 0 : i32
    return %arg0, %c0_i32 : i32, i32
  }
}

</mosaic_0001>

<llo_original>
// kernel: tpu_custom_call.1
$region0: #{tpu_custom_call.1}
  #allocation0 [shape = 'u32[]', space=smem, size = 0x4, offset = 0x4, fixed_abs, tag = 'smem constant byte address 0x4 - core index']
  #allocation1 [shape = 'u32[144,128]{1,0:T(1,128)}', space=vmem, size = 0x12000, scoped, tag = 'internal scratch']
  #allocation2 [shape = 'f32[8,128]{1,0:T(8,128)}', space=vmem, size = 0x1000, scoped, tag = 'scratch operand']
  #allocation3 [shape = 'f32[8,128]{1,0:T(8,128)}', space=vmem, size = 0x1000, scoped, tag = 'scratch operand']
  #allocation4 [shape = 'f32[8,128]{1,0:T(8,128)}', space=vmem, size = 0x1000, scoped, tag = 'scratch operand']
  #allocation5 [shape = 'f32[8,128]{1,0:T(8,128)}', space=vmem, size = 0x1000, scoped, tag = 'scratch operand']
  #allocation6 [shape = 'f32[8,128]{1,0:T(8,128)}', space=vmem, size = 0x1000, scoped, tag = 'scratch operand']
  %s0 = inlined_call_operand.hbm [shape: f32[8,256], index: 0, kind: input, shape index: {}]
  %s1 = inlined_call_operand.hbm [shape: f32[8,256], index: 1, kind: input, shape index: {}]
  %s2 = inlined_call_operand.vmem [shape: f32[8,1], index: 2, kind: output, shape index: {}]
  %s3 = sld [smem:[#allocation0]]
  $region34: #{tpu_custom_call.1} parent=0
    _
  %s5 = ssub.s32 1, %s3
  %s6 = scalar_select 0, %s5, %s3
  $region1: #{tpu_custom_call.1} parent=0
    #allocation7 [shape = 'u8[8192]{0}', space=vmem, size = 0x2000, scoped, tag = 'input window, operand 0, single buffered']
    #allocation8 [shape = 's32[1]{0}', space=sflag, size = 0x4, scoped, tag = 'scoped memory for tpu_custom_call.1']
    #allocation9 [shape = 'u8[8192]{0}', space=vmem, size = 0x2000, scoped, tag = 'input window, operand 1, single buffered']
    #allocation10 [shape = 's32[1]{0}', space=sflag, size = 0x4, scoped, tag = 'scoped memory for tpu_custom_call.1']
    %7 = vsyncpa [#allocation8], 0
    %8 = vsyncpa [#allocation10], 0
    // Predicated region
    $region2: #{tpu_custom_call.1} parent=1 // pred_check
      _
    $region3: #{tpu_custom_call.1} parent=1 // pred_check_branch
      %10 = sbr.rel (0) target = $region5
    $region4: #{tpu_custom_call.1} parent=1 // pred_region
      %s12 = ssub.s32 256, 256
      %13 = vsyncadd [#allocation8], %s12
      %s15 = sshll.u32 [#allocation7], 4
      %s16 = int_to_ptr.vmem [resolvable:$true] %s15
      %18 = dma.hbm_to_vmem [thread:$0]  %s0, 256, %s16, [#allocation8]
    $region5: #{tpu_custom_call.1} parent=1 // pred_fallthru
      _
    // Predicated region
    $region6: #{tpu_custom_call.1} parent=1 // pred_check
      _
    $region7: #{tpu_custom_call.1} parent=1 // pred_check_branch
      %20 = sbr.rel (0) target = $region9
    $region8: #{tpu_custom_call.1} parent=1 // pred_region
      %s22 = ssub.s32 256, 256
      %23 = vsyncadd [#allocation10], %s22
      %s25 = sshll.u32 [#allocation9], 4
      %s26 = int_to_ptr.vmem [resolvable:$true] %s25
      %28 = dma.hbm_to_vmem [thread:$0]  %s1, 256, %s26, [#allocation10]
    $region9: #{tpu_custom_call.1} parent=1 // pred_fallthru
      _
    // Predicated region
    $region10: #{tpu_custom_call.1} parent=1 // pred_check
      _
    $region11: #{tpu_custom_call.1} parent=1 // pred_check_branch
      %30 = sbr.rel (0) target = $region13
    $region12: #{tpu_custom_call.1} parent=1 // pred_region
      %31 = dma.done [#allocation8], 256
    $region13: #{tpu_custom_call.1} parent=1 // pred_fallthru
      _
    // Predicated region
    $region14: #{tpu_custom_call.1} parent=1 // pred_check
      _
    $region15: #{tpu_custom_call.1} parent=1 // pred_check_branch
      %33 = sbr.rel (0) target = $region17
    $region16: #{tpu_custom_call.1} parent=1 // pred_region
      %34 = dma.done [#allocation10], 256
    $region17: #{tpu_custom_call.1} parent=1 // pred_fallthru
      _
    %p35 = scmp.eq.s32.totalorder 0, 0
    // Predicated region
    $region18: #{tpu_custom_call.1} parent=1 // pred_check
      %p36 = pneg %p35
    $region19: #{tpu_custom_call.1} parent=1 // pred_check_branch
      %38 = sbr.rel (%p36) target = $region21
    $region20: #{tpu_custom_call.1} parent=1 // pred_region
      %39 = vst [vmem:[#allocation2] sm:$0xff] 0.0
      %40 = vst [vmem:[#allocation3] sm:$0xff] 0.0
      %41 = vst [vmem:[#allocation4] sm:$0xff] 0.0
      %42 = vst [vmem:[#allocation5] sm:$0xff] 0.0
      %43 = vst [vmem:[#allocation6] sm:$0xff] 0.0
    $region21: #{tpu_custom_call.1} parent=1 // pred_fallthru
      _
    %v44 = vld [vmem:[#allocation7] sm:$0xff]
    %v45 = vld [vmem:[#allocation9] sm:$0xff]
    %v46 = vmul.f32 %v44, %v44
    %v47 = vmul.f32 %v45, %v45
    %v48 = vmul.f32 %v44, %v45
    %v49 = vld [vmem:[#allocation7 + $0x8] sm:$0xff]
    %v50 = vld [vmem:[#allocation9 + $0x8] sm:$0xff]
    %v51 = vadd.f32 %v44, %v49
    %v52 = vadd.f32 %v45, %v50
    %v53 = vmul.f32 %v49, %v49
    %v54 = vadd.f32 %v46, %v53
    %v55 = vmul.f32 %v50, %v50
    %v56 = vadd.f32 %v47, %v55
    %v57 = vmul.f32 %v49, %v50
    %v58 = vadd.f32 %v48, %v57
    %v59 = vld [vmem:[#allocation2] sm:$0xff]
    %v60 = vadd.f32 %v59, %v51
    %61 = vst [vmem:[#allocation2] sm:$0xff] %v60
    %v62 = vld [vmem:[#allocation3] sm:$0xff]
    %v63 = vadd.f32 %v62, %v52
    %64 = vst [vmem:[#allocation3] sm:$0xff] %v63
    %v65 = vld [vmem:[#allocation4] sm:$0xff]
    %v66 = vadd.f32 %v65, %v54
    %67 = vst [vmem:[#allocation4] sm:$0xff] %v66
    %v68 = vld [vmem:[#allocation5] sm:$0xff]
    %v69 = vadd.f32 %v68, %v56
    %70 = vst [vmem:[#allocation5] sm:$0xff] %v69
    %v71 = vld [vmem:[#allocation6] sm:$0xff]
    %v72 = vadd.f32 %v71, %v58
    %73 = vst [vmem:[#allocation6] sm:$0xff] %v72
    // Predicated region
    $region22: #{tpu_custom_call.1} parent=1 // pred_check
      %p74 = pneg %p35
    $region23: #{tpu_custom_call.1} parent=1 // pred_check_branch
      %76 = sbr.rel (%p74) target = $region25
    $region24: #{tpu_custom_call.1} parent=1 // pred_region
      %v77 = vld [vmem:[#allocation2] sm:$0xff]
      %78 = vadd.xlane.f32.xlu0 %v77
      %v79 = vpop.xlane.xlu0 %78
      %v80 = vld [vmem:[#allocation3] sm:$0xff]
      %81 = vadd.xlane.f32.xlu0 %v80
      %v82 = vpop.xlane.xlu0 %81
      %v83 = vld [vmem:[#allocation4] sm:$0xff]
      %84 = vadd.xlane.f32.xlu0 %v83
      %v85 = vpop.xlane.xlu0 %84
      %v86 = vld [vmem:[#allocation5] sm:$0xff]
      %87 = vadd.xlane.f32.xlu0 %v86
      %v88 = vpop.xlane.xlu0 %87
      %v89 = vld [vmem:[#allocation6] sm:$0xff]
      %90 = vadd.xlane.f32.xlu0 %v89
      %v91 = vpop.xlane.xlu0 %90
      %v92 = vmul.f32 %v91, %v91
      %v93 = vmax.f32 %v85, 1e-16
      %v94 = vmax.f32 %v88, 1e-16
      %v95 = vmul.f32 %v93, %v94
      %v96 = vrcp.pop %v95
      %v97 = vmul.f32 %v92, %v96
      %v98 = vmul.f32 %v79, %v79
      %v99 = vrcp.pop 256.0
      %v100 = vmul.f32 %v98, %v99
      %v101 = vsub.f32 %v85, %v100
      %v102 = vrcp.pop 255.0
      %v103 = vmul.f32 %v101, %v102
      %v104 = vmul.f32 %v82, %v82
      %v105 = vmul.f32 %v104, %v99
      %v106 = vsub.f32 %v88, %v105
      %v107 = vmul.f32 %v106, %v102
      %v108 = vmul.f32 %v103, %v107
      %v109 = vadd.f32 %v108, 1e-08
      %v110 = vrcp.pop %v109
      %v111 = vmul.f32 %v97, %v110
      %vm112 = vcmask 7168
      %113 = vst.msk [vmem:[%s2] sm:$0xff] %vm112, %v111
    $region25: #{tpu_custom_call.1} parent=1 // pred_fallthru
      _
    // Predicated region
    $region26: #{tpu_custom_call.1} parent=1 // pred_check
      _
    $region27: #{tpu_custom_call.1} parent=1 // pred_check_branch
      %115 = sbr.rel (0) target = $region29
    $region28: #{tpu_custom_call.1} parent=1 // pred_region
      _
    $region29: #{tpu_custom_call.1} parent=1 // pred_fallthru
      _
    // Predicated region
    $region30: #{tpu_custom_call.1} parent=1 // pred_check
      _
    $region31: #{tpu_custom_call.1} parent=1 // pred_check_branch
      %117 = sbr.rel (0) target = $region33
    $region32: #{tpu_custom_call.1} parent=1 // pred_region
      _
    $region33: #{tpu_custom_call.1} parent=1 // pred_fallthru
      _
    %118 = vsyncpa [#allocation8], 1
    %119 = vsyncpa [#allocation10], 1

</llo_original>
